<compile_context>
chip_gen: v5e
topology: v5e:2x2
jax: 0.10.0
libtpu: 0.0.40
codegen_flags: <defaults>
</compile_context>

<pallas_src>
import numpy as np
import jax
import jax.numpy as jnp
from jax import lax
from jax.experimental import pallas as pl
from jax.experimental.pallas import tpu as pltpu


def _make_kernel(H):
    """Builds the kernel with the static per-image height H closed over."""

    def kernel(x_ref, w1_ref, w2_ref, bn_ref, o_ref):
        """One block of Bblk stacked images per grid step.

        x_ref  : (M, WC)     bf16, M = Bblk*H lane-packed rows p[b*H+h, w*C+c]
        w1_ref : (3, WC, WC) bf16, block-banded conv_pw weights (one per kh tap)
        w2_ref : (3, WC, WC) bf16, block-banded conv_pwl weights
        bn_ref : (4, WC)     f32, rows = [scale1, shift1, scale2, shift2]
        o_ref  : (M, WC)     bf16
        """
        M, WC = x_ref.shape

        # Row index within each image: used to mask the h-1 / h+1 tap
        # contributions so halos never leak across fused batch elements.
        row = lax.broadcasted_iota(jnp.int32, (M, 1), 0) % H
        has_above = row != 0
        has_below = row != (H - 1)

        def conv3x3(p_b, w_ref):
            # Three accumulating K=WC matmuls (one per kh tap). The W-direction
            # halo is folded into the banded weights; the H-direction halo is
            # applied by rolling the f32 results one row on the XLU and masking
            # the per-image boundary rows (no bf16 concats, no padded scratch).
            t_top = jnp.dot(p_b, w_ref[0], preferred_element_type=jnp.float32)
            t_mid = jnp.dot(p_b, w_ref[1], preferred_element_type=jnp.float32)
            t_bot = jnp.dot(p_b, w_ref[2], preferred_element_type=jnp.float32)
            # output row i needs input row i-1 through the top tap:
            from_above = jnp.where(has_above,
                                   pltpu.roll(t_top, 1, axis=0), 0.0)
            # output row i needs input row i+1 through the bottom tap
            # (shift M-1 == cyclic shift -1, kept positive for safety):
            from_below = jnp.where(has_below,
                                   pltpu.roll(t_bot, M - 1, axis=0), 0.0)
            return t_mid + from_above + from_below

        scale1 = bn_ref[0, :]
        shift1 = bn_ref[1, :]
        scale2 = bn_ref[2, :]
        shift2 = bn_ref[3, :]

        p0 = x_ref[...]                                      # bf16 operands
        # conv_pw -> bn1 (folded) -> relu (act1); post-matmul math in f32.
        h1 = jnp.maximum(conv3x3(p0, w1_ref) * scale1 + shift1, 0.0)
        # conv_pwl -> bn3 (folded); single f32->bf16 cast for the 2nd conv.
        y = conv3x3(h1.astype(p0.dtype), w2_ref) * scale2 + shift2
        # non-vital residual (equal channel counts -> plain add), final relu.
        y = jnp.maximum(y + p0.astype(jnp.float32), 0.0)
        o_ref[...] = y.astype(o_ref.dtype)

    return kernel


def _pack_conv3x3(w_oihw, w_spatial):
    """OIHW (Co, Ci, 3, 3) conv weights -> (3, W*Ci, W*Co) banded matrices.

    For a lane-packed activation row p[w*Ci + ci] = x[w, ci], the product
    p @ M[dh] gives, at column wo*Co + co, the 3x3-conv contribution of input
    row (h + dh - 1) with 'same' zero padding along W.
    """
    w = np.asarray(w_oihw, np.float32)
    co, ci, kh, kw = w.shape
    wt = np.transpose(w, (2, 3, 1, 0))                      # (kh, kw, ci, co)
    m = np.zeros((kh, w_spatial * ci, w_spatial * co), np.float32)
    for dh in range(kh):
        for wo in range(w_spatial):
            for dw in range(kw):
                wi = wo + dw - 1
                if 0 <= wi < w_spatial:
                    m[dh, wi * ci:(wi + 1) * ci,
                         wo * co:(wo + 1) * co] = wt[dh, dw]
    return jnp.asarray(m)


def _pick_batch_block(B, H, target_rows=256, min_rows=128):
    """Pick Bblk (divides B) so M = Bblk*H fills the MXU; keep grid>=2 if we
    can do so without dropping M below min_rows (v7x has two TensorCores)."""
    divs = [d for d in range(1, B + 1)
            if B % d == 0 and ((d * H) % 8 == 0 or d == B)]
    cand = next((d for d in divs if d * H >= target_rows), divs[-1])
    if B // cand < 2:
        alt = [d for d in divs if B // d >= 2 and d * H >= min_rows]
        if alt:
            cand = alt[-1]
    return cand


def ds_basic_block_noskipv2(x_nchw, w1, w2, bn1_params, bn3_params, eps=1e-5):
    """Forward pass of DSBasicBlockNoskipv2 (largest mode, no gate, eval BN).

    x_nchw     : (B, C, H, W) float32       (PyTorch NCHW convention)
    w1, w2     : (Co, Ci, 3, 3) float32     (PyTorch OIHW convention)
    bn*_params : (gamma, beta, running_mean, running_var), each (Co,)
    """
    B, C, H, W = x_nchw.shape
    Co = w1.shape[0]
    assert Co == C, "non-vital path requires in_channels == out_channels"
    WC = W * C
    # TODO(synk): for general shapes, pad W*C up to a multiple of 128 (or fall
    # back to a channel-padded im2col path); the module/test config gives 128.
    assert WC % 128 == 0, "lane-packed layout wants W*C to be a multiple of 128"
    # TODO(synk): for very large W*C the banded weights are O((W*C)^2); tile
    # the output-W/N dimension with a grid axis (or single-buffer the constant
    # weight specs via pipeline_mode=pl.Buffered(1)) to stay inside v7x VMEM.

    # NCHW -> lane-packed (B*H, W*C) bf16 rows.
    # TODO(synk): when chaining blocks, keep this packed bf16 layout between
    # blocks and drop the NCHW transposes at both ends of the wrapper.
    x_packed = (jnp.transpose(x_nchw, (0, 2, 3, 1))
                .reshape(B * H, WC).astype(jnp.bfloat16))

    # Banded matmul weights, one (WC, WC) matrix per kh tap (constant index
    # maps keep them resident in VMEM across the whole grid).
    w1p = _pack_conv3x3(w1, W).astype(jnp.bfloat16)          # (3, WC, WC)
    w2p = _pack_conv3x3(w2, W).astype(jnp.bfloat16)          # (3, WC, WC)

    # Fold inference-mode batchnorm into per-channel scale/shift, tiled over W
    # to match the lane-packed layout.
    # TODO(synk): training-mode batch statistics and the dynamic channel_choice
    # slimming of DSConv2d/DSBatchNorm2d (gate path) are not implemented; this
    # is the default 'largest' / eval path.
    g1, b1, m1, v1 = bn1_params
    g2, b2, m2, v2 = bn3_params
    s1 = g1 / jnp.sqrt(v1 + eps)
    s2 = g2 / jnp.sqrt(v2 + eps)
    bn = jnp.stack([jnp.tile(s1, W), jnp.tile(b1 - m1 * s1, W),
                    jnp.tile(s2, W), jnp.tile(b2 - m2 * s2, W)],
                   axis=0).astype(jnp.float32)               # (4, WC)

    Bblk = _pick_batch_block(B, H)
    M = Bblk * H

    out_packed = pl.pallas_call(
        _make_kernel(H),
        out_shape=jax.ShapeDtypeStruct((B * H, WC), jnp.bfloat16),
        grid_spec=pltpu.PrefetchScalarGridSpec(
            num_scalar_prefetch=0,
            grid=(B // Bblk,),
            in_specs=[
                pl.BlockSpec((M, WC), lambda i: (i, 0)),
                pl.BlockSpec((3, WC, WC), lambda i: (0, 0, 0)),
                pl.BlockSpec((3, WC, WC), lambda i: (0, 0, 0)),
                pl.BlockSpec((4, WC), lambda i: (0, 0)),
            ],
            out_specs=pl.BlockSpec((M, WC), lambda i: (i, 0)),
        ),
        compiler_params=pltpu.CompilerParams(
            dimension_semantics=("parallel",)),
    )(x_packed, w1p, w2p, bn)

    # Unpack back to NCHW / input dtype (PyTorch convention).
    out = out_packed.reshape(B, H, W, C)
    return jnp.transpose(out, (0, 3, 1, 2)).astype(x_nchw.dtype)


def _reference_forward(x_nchw, w1, w2, bn1_params, bn3_params, eps=1e-5,
                       simulate_bf16=False):
    """Pure-JAX reference mirroring the PyTorch forward.

    With simulate_bf16=True, conv operands (and the conv_pwl input / residual)
    are rounded to bf16 with f32 accumulation, matching the kernel's numerics
    (the kernel additionally rounds the final output to bf16).
    """
    rnd = ((lambda a: a.astype(jnp.bfloat16).astype(jnp.float32))
           if simulate_bf16 else (lambda a: a))

    def conv(a, w):
        return lax.conv_general_dilated(
            rnd(a), rnd(w), window_strides=(1, 1), padding=((1, 1), (1, 1)),
            dimension_numbers=("NCHW", "OIHW", "NCHW"),
            precision=lax.Precision.HIGHEST)

    def bn(a, p):
        g, b, m, v = p
        inv = g / jnp.sqrt(v + eps)
        return a * inv[None, :, None, None] + (b - m * inv)[None, :, None, None]

    h = jax.nn.relu(bn(conv(x_nchw, w1), bn1_params))
    y = bn(conv(h, w2), bn3_params)
    y = y + rnd(x_nchw)          # non-vital path, equal channel counts
    return jax.nn.relu(y)


if __name__ == "__main__":
    # Shapes consistent with the module: in_channels_list=[8],
    # out_channels_list=[8], kernel_size=3, stride=1 -> vital=False.
    # W*C = 16*8 = 128 gives an exactly lane-dense packing; both batch
    # elements are fused into one M=32 matmul block.
    B, C, H, W = 2, 8, 16, 16
    key = jax.random.PRNGKey(0)
    ks = jax.random.split(key, 11)

    x = jax.random.normal(ks[0], (B, C, H, W), jnp.float32)
    w1 = jax.random.normal(ks[1], (C, C, 3, 3), jnp.float32) * 0.1  # conv_pw
    w2 = jax.random.normal(ks[2], (C, C, 3, 3), jnp.float32) * 0.1  # conv_pwl

    # NOTE: the PyTorch module zero-inits bn3's gamma (set_zero_weight); we use
    # nonzero deterministic values so the full compute path is exercised.
    bn1_params = (
        jax.random.uniform(ks[3], (C,), minval=0.5, maxval=1.5),  # gamma
        jax.random.normal(ks[4], (C,)) * 0.1,                     # beta
        jax.random.normal(ks[5], (C,)) * 0.1,                     # running mean
        jax.random.uniform(ks[6], (C,), minval=0.5, maxval=1.5),  # running var
    )
    bn3_params = (
        jax.random.uniform(ks[7], (C,), minval=0.5, maxval=1.5),
        jax.random.normal(ks[8], (C,)) * 0.1,
        jax.random.normal(ks[9], (C,)) * 0.1,
        jax.random.uniform(ks[10], (C,), minval=0.5, maxval=1.5),
    )

    out = ds_basic_block_noskipv2(x, w1, w2, bn1_params, bn3_params)
    out = jax.block_until_ready(out)
    assert out.shape == (B, C, H, W), out.shape

    # Tight check against a bf16-consistent reference (same operand rounding,
    # f32 accumulation; kernel additionally rounds output to bf16), plus a
    # loose sanity check against the pure-f32 module math.
    ref_bf16 = _reference_forward(x, w1, w2, bn1_params, bn3_params,
                                  simulate_bf16=True)
    ref_f32 = _reference_forward(x, w1, w2, bn1_params, bn3_params)
    err_bf16 = float(jnp.max(jnp.abs(out - ref_bf16)))
    err_f32 = float(jnp.max(jnp.abs(out - ref_f32)))
    assert jnp.allclose(out, ref_bf16, atol=2e-2, rtol=2e-2), \
        f"bf16-consistent ref max_err={err_bf16}"
    assert jnp.allclose(out, ref_f32, atol=1e-1, rtol=1e-1), \
        f"f32 ref max_err={err_f32}"

    print("KERNEL_OK")
</pallas_src>

<mosaic_0001>
module attributes {stable_mosaic.version = 11 : i64} {
  func.func @kernel(%arg0: i32, %arg1: memref<32x128xbf16, #tpu.memory_space<vmem>>, %arg2: memref<3x128x128xbf16, #tpu.memory_space<vmem>>, %arg3: memref<3x128x128xbf16, #tpu.memory_space<vmem>>, %arg4: memref<4x128xf32, #tpu.memory_space<vmem>>, %arg5: memref<32x128xbf16, #tpu.memory_space<vmem>>) attributes {dimension_semantics = [#tpu.dimension_semantics<parallel>], iteration_bounds = array<i64: 1>, scalar_prefetch = 0 : i64, scratch_operands = 0 : i64, tpu.core_type = #tpu.core_type<tc>, window_params = [{transform_indices = @transform_0, window_bounds = array<i64: 32, 128>}, {pipeline_mode = #tpu.pipeline_mode<synchronous>, transform_indices = @transform_1, window_bounds = array<i64: 3, 128, 128>}, {pipeline_mode = #tpu.pipeline_mode<synchronous>, transform_indices = @transform_2, window_bounds = array<i64: 3, 128, 128>}, {pipeline_mode = #tpu.pipeline_mode<synchronous>, transform_indices = @transform_3, window_bounds = array<i64: 4, 128>}, {transform_indices = @transform_4, window_bounds = array<i64: 32, 128>}]} {
    %0 = tpu.iota {dimensions = array<i32: 0>} : vector<32x1xi32>
    %c16_i32 = arith.constant 16 : i32
    %c0_i32 = arith.constant 0 : i32
    %1 = arith.cmpi eq, %c16_i32, %c0_i32 : i32
    %c1_i32 = arith.constant 1 : i32
    %2 = arith.select %1, %c1_i32, %c16_i32 : i32
    %3 = vector.broadcast %2 : i32 to vector<32x1xi32>
    %4 = arith.remsi %0, %3 : vector<32x1xi32>
    %c0_i32_0 = arith.constant 0 : i32
    %5 = vector.broadcast %c0_i32_0 : i32 to vector<32x1xi32>
    %6 = arith.cmpi ne, %4, %5 : vector<32x1xi32>
    %c0_i32_1 = arith.constant 0 : i32
    %7 = vector.broadcast %c0_i32_1 : i32 to vector<32x1xi32>
    %8 = arith.cmpi slt, %4, %7 : vector<32x1xi32>
    %c0_i32_2 = arith.constant 0 : i32
    %9 = arith.cmpi slt, %2, %c0_i32_2 : i32
    %10 = vector.broadcast %9 : i1 to vector<32x1xi1>
    %11 = vector.broadcast %10 : vector<32x1xi1> to vector<32x1xi1>
    %12 = arith.xori %8, %11 : vector<32x1xi1>
    %13 = arith.andi %12, %6 : vector<32x1xi1>
    %14 = vector.broadcast %2 : i32 to vector<32x1xi32>
    %15 = arith.addi %4, %14 : vector<32x1xi32>
    %16 = arith.select %13, %15, %4 : vector<32x1xi1>, vector<32x1xi32>
    %c0_i32_3 = arith.constant 0 : i32
    %17 = vector.broadcast %c0_i32_3 : i32 to vector<32x1xi32>
    %18 = arith.cmpi ne, %16, %17 : vector<32x1xi32>
    %c15_i32 = arith.constant 15 : i32
    %19 = vector.broadcast %c15_i32 : i32 to vector<32x1xi32>
    %20 = arith.cmpi ne, %16, %19 : vector<32x1xi32>
    %c0 = arith.constant 0 : index
    %c0_4 = arith.constant 0 : index
    %21 = vector.load %arg4[%c0, %c0_4] : memref<4x128xf32, #tpu.memory_space<vmem>>, vector<1x128xf32>
    %22 = vector.shape_cast %21 : vector<1x128xf32> to vector<128xf32>
    %c1 = arith.constant 1 : index
    %c0_5 = arith.constant 0 : index
    %23 = vector.load %arg4[%c1, %c0_5] : memref<4x128xf32, #tpu.memory_space<vmem>>, vector<1x128xf32>
    %24 = vector.shape_cast %23 : vector<1x128xf32> to vector<128xf32>
    %c2 = arith.constant 2 : index
    %c0_6 = arith.constant 0 : index
    %25 = vector.load %arg4[%c2, %c0_6] : memref<4x128xf32, #tpu.memory_space<vmem>>, vector<1x128xf32>
    %26 = vector.shape_cast %25 : vector<1x128xf32> to vector<128xf32>
    %c3 = arith.constant 3 : index
    %c0_7 = arith.constant 0 : index
    %27 = vector.load %arg4[%c3, %c0_7] : memref<4x128xf32, #tpu.memory_space<vmem>>, vector<1x128xf32>
    %28 = vector.shape_cast %27 : vector<1x128xf32> to vector<128xf32>
    %c0_8 = arith.constant 0 : index
    %c0_9 = arith.constant 0 : index
    %29 = vector.load %arg1[%c0_8, %c0_9] : memref<32x128xbf16, #tpu.memory_space<vmem>>, vector<32x128xbf16>
    %c0_10 = arith.constant 0 : index
    %c0_11 = arith.constant 0 : index
    %c0_12 = arith.constant 0 : index
    %30 = vector.load %arg2[%c0_10, %c0_11, %c0_12] : memref<3x128x128xbf16, #tpu.memory_space<vmem>>, vector<1x128x128xbf16>
    %31 = vector.shape_cast %30 : vector<1x128x128xbf16> to vector<128x128xbf16>
    %cst = arith.constant dense<0.000000e+00> : vector<32x128xf32>
    %32 = tpu.matmul %29, %31, %cst {dimension_numbers = #tpu.dot_dimension_numbers<[1], [0], [0], [1], [0, 0, 1, 1], [], []>} : vector<32x128xbf16>, vector<128x128xbf16>, vector<32x128xf32> -> vector<32x128xf32>
    %c1_13 = arith.constant 1 : index
    %c0_14 = arith.constant 0 : index
    %c0_15 = arith.constant 0 : index
    %33 = vector.load %arg2[%c1_13, %c0_14, %c0_15] : memref<3x128x128xbf16, #tpu.memory_space<vmem>>, vector<1x128x128xbf16>
    %34 = vector.shape_cast %33 : vector<1x128x128xbf16> to vector<128x128xbf16>
    %cst_16 = arith.constant dense<0.000000e+00> : vector<32x128xf32>
    %35 = tpu.matmul %29, %34, %cst_16 {dimension_numbers = #tpu.dot_dimension_numbers<[1], [0], [0], [1], [0, 0, 1, 1], [], []>} : vector<32x128xbf16>, vector<128x128xbf16>, vector<32x128xf32> -> vector<32x128xf32>
    %c2_17 = arith.constant 2 : index
    %c0_18 = arith.constant 0 : index
    %c0_19 = arith.constant 0 : index
    %36 = vector.load %arg2[%c2_17, %c0_18, %c0_19] : memref<3x128x128xbf16, #tpu.memory_space<vmem>>, vector<1x128x128xbf16>
    %37 = vector.shape_cast %36 : vector<1x128x128xbf16> to vector<128x128xbf16>
    %cst_20 = arith.constant dense<0.000000e+00> : vector<32x128xf32>
    %38 = tpu.matmul %29, %37, %cst_20 {dimension_numbers = #tpu.dot_dimension_numbers<[1], [0], [0], [1], [0, 0, 1, 1], [], []>} : vector<32x128xbf16>, vector<128x128xbf16>, vector<32x128xf32> -> vector<32x128xf32>
    %c1_i32_21 = arith.constant 1 : i32
    %39 = tpu.dynamic_rotate %32 by %c1_i32_21 dim 0 : vector<32x128xf32>, i32 -> vector<32x128xf32>
    %cst_22 = arith.constant 0.000000e+00 : f32
    %40 = vector.shape_cast %18 : vector<32x1xi1> to vector<32x1xi1>
    %41 = vector.broadcast %40 : vector<32x1xi1> to vector<32x128xi1>
    %42 = vector.broadcast %cst_22 : f32 to vector<32x128xf32>
    %43 = arith.select %41, %39, %42 : vector<32x128xi1>, vector<32x128xf32>
    %c31_i32 = arith.constant 31 : i32
    %44 = tpu.dynamic_rotate %38 by %c31_i32 dim 0 : vector<32x128xf32>, i32 -> vector<32x128xf32>
    %cst_23 = arith.constant 0.000000e+00 : f32
    %45 = vector.shape_cast %20 : vector<32x1xi1> to vector<32x1xi1>
    %46 = vector.broadcast %45 : vector<32x1xi1> to vector<32x128xi1>
    %47 = vector.broadcast %cst_23 : f32 to vector<32x128xf32>
    %48 = arith.select %46, %44, %47 : vector<32x128xi1>, vector<32x128xf32>
    %49 = arith.addf %35, %43 : vector<32x128xf32>
    %50 = arith.addf %49, %48 : vector<32x128xf32>
    %51 = vector.shape_cast %22 : vector<128xf32> to vector<1x128xf32>
    %52 = vector.broadcast %51 : vector<1x128xf32> to vector<32x128xf32>
    %53 = arith.mulf %50, %52 : vector<32x128xf32>
    %54 = vector.shape_cast %24 : vector<128xf32> to vector<1x128xf32>
    %55 = vector.broadcast %54 : vector<1x128xf32> to vector<32x128xf32>
    %56 = arith.addf %53, %55 : vector<32x128xf32>
    %cst_24 = arith.constant 0.000000e+00 : f32
    %57 = vector.broadcast %cst_24 : f32 to vector<32x128xf32>
    %58 = arith.maximumf %56, %57 : vector<32x128xf32>
    %59 = arith.truncf %58 : vector<32x128xf32> to vector<32x128xbf16>
    %c0_25 = arith.constant 0 : index
    %c0_26 = arith.constant 0 : index
    %c0_27 = arith.constant 0 : index
    %60 = vector.load %arg3[%c0_25, %c0_26, %c0_27] : memref<3x128x128xbf16, #tpu.memory_space<vmem>>, vector<1x128x128xbf16>
    %61 = vector.shape_cast %60 : vector<1x128x128xbf16> to vector<128x128xbf16>
    %cst_28 = arith.constant dense<0.000000e+00> : vector<32x128xf32>
    %62 = tpu.matmul %59, %61, %cst_28 {dimension_numbers = #tpu.dot_dimension_numbers<[1], [0], [0], [1], [0, 0, 1, 1], [], []>} : vector<32x128xbf16>, vector<128x128xbf16>, vector<32x128xf32> -> vector<32x128xf32>
    %c1_29 = arith.constant 1 : index
    %c0_30 = arith.constant 0 : index
    %c0_31 = arith.constant 0 : index
    %63 = vector.load %arg3[%c1_29, %c0_30, %c0_31] : memref<3x128x128xbf16, #tpu.memory_space<vmem>>, vector<1x128x128xbf16>
    %64 = vector.shape_cast %63 : vector<1x128x128xbf16> to vector<128x128xbf16>
    %cst_32 = arith.constant dense<0.000000e+00> : vector<32x128xf32>
    %65 = tpu.matmul %59, %64, %cst_32 {dimension_numbers = #tpu.dot_dimension_numbers<[1], [0], [0], [1], [0, 0, 1, 1], [], []>} : vector<32x128xbf16>, vector<128x128xbf16>, vector<32x128xf32> -> vector<32x128xf32>
    %c2_33 = arith.constant 2 : index
    %c0_34 = arith.constant 0 : index
    %c0_35 = arith.constant 0 : index
    %66 = vector.load %arg3[%c2_33, %c0_34, %c0_35] : memref<3x128x128xbf16, #tpu.memory_space<vmem>>, vector<1x128x128xbf16>
    %67 = vector.shape_cast %66 : vector<1x128x128xbf16> to vector<128x128xbf16>
    %cst_36 = arith.constant dense<0.000000e+00> : vector<32x128xf32>
    %68 = tpu.matmul %59, %67, %cst_36 {dimension_numbers = #tpu.dot_dimension_numbers<[1], [0], [0], [1], [0, 0, 1, 1], [], []>} : vector<32x128xbf16>, vector<128x128xbf16>, vector<32x128xf32> -> vector<32x128xf32>
    %c1_i32_37 = arith.constant 1 : i32
    %69 = tpu.dynamic_rotate %62 by %c1_i32_37 dim 0 : vector<32x128xf32>, i32 -> vector<32x128xf32>
    %cst_38 = arith.constant 0.000000e+00 : f32
    %70 = vector.shape_cast %18 : vector<32x1xi1> to vector<32x1xi1>
    %71 = vector.broadcast %70 : vector<32x1xi1> to vector<32x128xi1>
    %72 = vector.broadcast %cst_38 : f32 to vector<32x128xf32>
    %73 = arith.select %71, %69, %72 : vector<32x128xi1>, vector<32x128xf32>
    %c31_i32_39 = arith.constant 31 : i32
    %74 = tpu.dynamic_rotate %68 by %c31_i32_39 dim 0 : vector<32x128xf32>, i32 -> vector<32x128xf32>
    %cst_40 = arith.constant 0.000000e+00 : f32
    %75 = vector.shape_cast %20 : vector<32x1xi1> to vector<32x1xi1>
    %76 = vector.broadcast %75 : vector<32x1xi1> to vector<32x128xi1>
    %77 = vector.broadcast %cst_40 : f32 to vector<32x128xf32>
    %78 = arith.select %76, %74, %77 : vector<32x128xi1>, vector<32x128xf32>
    %79 = arith.addf %65, %73 : vector<32x128xf32>
    %80 = arith.addf %79, %78 : vector<32x128xf32>
    %81 = vector.shape_cast %26 : vector<128xf32> to vector<1x128xf32>
    %82 = vector.broadcast %81 : vector<1x128xf32> to vector<32x128xf32>
    %83 = arith.mulf %80, %82 : vector<32x128xf32>
    %84 = vector.shape_cast %28 : vector<128xf32> to vector<1x128xf32>
    %85 = vector.broadcast %84 : vector<1x128xf32> to vector<32x128xf32>
    %86 = arith.addf %83, %85 : vector<32x128xf32>
    %87 = arith.extf %29 : vector<32x128xbf16> to vector<32x128xf32>
    %88 = arith.addf %86, %87 : vector<32x128xf32>
    %cst_41 = arith.constant 0.000000e+00 : f32
    %89 = vector.broadcast %cst_41 : f32 to vector<32x128xf32>
    %90 = arith.maximumf %88, %89 : vector<32x128xf32>
    %91 = arith.truncf %90 : vector<32x128xf32> to vector<32x128xbf16>
    %c0_42 = arith.constant 0 : index
    %c0_43 = arith.constant 0 : index
    %92 = vector.load %arg5[%c0_42, %c0_43] : memref<32x128xbf16, #tpu.memory_space<vmem>>, vector<32x128xbf16>
    tpu.vector_store %arg5[%c0_42, %c0_43], %91 {strides = array<i32>} : memref<32x128xbf16, #tpu.memory_space<vmem>>, vector<32x128xbf16>,
    return
  }
  func.func @transform_0(%arg0: i32) -> (i32, i32) {
    %c0_i32 = arith.constant 0 : i32
    %c0_i32_0 = arith.constant 0 : i32
    return %arg0, %c0_i32 : i32, i32
  }
  func.func @transform_1(%arg0: i32) -> (i32, i32, i32) {
    %c0_i32 = arith.constant 0 : i32
    %c0_i32_0 = arith.constant 0 : i32
    %c0_i32_1 = arith.constant 0 : i32
    %c0_i32_2 = arith.constant 0 : i32
    return %c0_i32, %c0_i32_0, %c0_i32_1 : i32, i32, i32
  }
  func.func @transform_2(%arg0: i32) -> (i32, i32, i32) {
    %c0_i32 = arith.constant 0 : i32
    %c0_i32_0 = arith.constant 0 : i32
    %c0_i32_1 = arith.constant 0 : i32
    %c0_i32_2 = arith.constant 0 : i32
    return %c0_i32, %c0_i32_0, %c0_i32_1 : i32, i32, i32
  }
  func.func @transform_3(%arg0: i32) -> (i32, i32) {
    %c0_i32 = arith.constant 0 : i32
    %c0_i32_0 = arith.constant 0 : i32
    %c0_i32_1 = arith.constant 0 : i32
    return %c0_i32, %c0_i32_0 : i32, i32
  }
  func.func @transform_4(%arg0: i32) -> (i32, i32) {
    %c0_i32 = arith.constant 0 : i32
    %c0_i32_0 = arith.constant 0 : i32
    return %arg0, %c0_i32 : i32, i32
  }
}

</mosaic_0001>

<llo_original>
// kernel: tpu_custom_call.1
$region0: #{tpu_custom_call.1}
  #allocation0 [shape = 'u32[]', space=smem, size = 0x4, offset = 0x4, fixed_abs, tag = 'smem constant byte address 0x4 - core index']
  #allocation1 [shape = 'u32[72,128]{1,0:T(1,128)}', space=vmem, size = 0x9000, scoped, tag = 'internal scratch']
  %s0 = inlined_call_operand.hbm [shape: bf16[32,128], index: 0, kind: input, shape index: {}]
  %s1 = inlined_call_operand.hbm [shape: bf16[3,128,128], index: 1, kind: input, shape index: {}]
  %s2 = inlined_call_operand.hbm [shape: bf16[3,128,128], index: 2, kind: input, shape index: {}]
  %s3 = inlined_call_operand.hbm [shape: f32[4,128], index: 3, kind: input, shape index: {}]
  %s4 = inlined_call_operand.hbm [shape: bf16[32,128], index: 4, kind: output, shape index: {}]
  %s5 = sld [smem:[#allocation0]]
  $region42: #{tpu_custom_call.1} parent=0
    _
  %s7 = ssub.s32 1, %s5
  %s8 = scalar_select 0, %s7, %s5
  $region1: #{tpu_custom_call.1} parent=0
    #allocation2 [shape = 'u8[8192]{0}', space=vmem, size = 0x2000, scoped, tag = 'input window, operand 0, single buffered']
    #allocation3 [shape = 's32[1]{0}', space=sflag, size = 0x4, scoped, tag = 'scoped memory for tpu_custom_call.1']
    #allocation4 [shape = 's32[1]{0}', space=sflag, size = 0x4, scoped, tag = 'scoped memory for tpu_custom_call.1']
    #allocation5 [shape = 'u8[98304]{0}', space=vmem, size = 0x18000, scoped, tag = 'input window, operand 1, single buffered']
    #allocation6 [shape = 's32[1]{0}', space=sflag, size = 0x4, scoped, tag = 'scoped memory for tpu_custom_call.1']
    #allocation7 [shape = 'u8[98304]{0}', space=vmem, size = 0x18000, scoped, tag = 'input window, operand 2, single buffered']
    #allocation8 [shape = 'u8[2048]{0}', space=vmem, size = 0x800, scoped, tag = 'input window, operand 3, single buffered']
    #allocation9 [shape = 's32[1]{0}', space=sflag, size = 0x4, scoped, tag = 'scoped memory for tpu_custom_call.1']
    #allocation10 [shape = 'u8[8192]{0}', space=vmem, size = 0x2000, scoped, tag = 'output window, operand 0, single buffered']
    %9 = vsyncpa [#allocation3], 0
    %10 = vsyncpa [#allocation6], 0
    %11 = vsyncpa [#allocation9], 0
    %12 = vsyncpa [#allocation4], 0
    // Predicated region
    $region2: #{tpu_custom_call.1} parent=1 // pred_check
      _
    $region3: #{tpu_custom_call.1} parent=1 // pred_check_branch
      %14 = sbr.rel (0) target = $region5
    $region4: #{tpu_custom_call.1} parent=1 // pred_region
      %16 = vsyncadd [#allocation3], 0
      %s17 = sshll.u32 %s0, 4
      %s18 = int_to_ptr.hbm [resolvable:$true] %s17
      %s19 = sshll.u32 [#allocation2], 4
      %s20 = int_to_ptr.vmem [resolvable:$true] %s19
      %25 = dma.hbm_to_vmem [thread:$0]  %s18, 256, %s20, [#allocation3], 64, 64, 4
    $region5: #{tpu_custom_call.1} parent=1 // pred_fallthru
      _
    // Predicated region
    $region6: #{tpu_custom_call.1} parent=1 // pred_check
      _
    $region7: #{tpu_custom_call.1} parent=1 // pred_check_branch
      %27 = sbr.rel (0) target = $region9
    $region8: #{tpu_custom_call.1} parent=1 // pred_region
      %29 = vsyncadd [#allocation6], 0
      %s30 = sshll.u32 %s1, 4
      %s31 = int_to_ptr.hbm [resolvable:$true] %s30
      %s32 = sshll.u32 [#allocation5], 4
      %s33 = int_to_ptr.vmem [resolvable:$true] %s32
      %38 = dma.hbm_to_vmem [thread:$0]  %s31, 3072, %s33, [#allocation6], 64, 64, 4
    $region9: #{tpu_custom_call.1} parent=1 // pred_fallthru
      _
    // Predicated region
    $region10: #{tpu_custom_call.1} parent=1 // pred_check
      _
    $region11: #{tpu_custom_call.1} parent=1 // pred_check_branch
      %40 = sbr.rel (0) target = $region13
    $region12: #{tpu_custom_call.1} parent=1 // pred_region
      %42 = vsyncadd [#allocation6], 0
      %s43 = sshll.u32 %s2, 4
      %s44 = int_to_ptr.hbm [resolvable:$true] %s43
      %s45 = sshll.u32 [#allocation7], 4
      %s46 = int_to_ptr.vmem [resolvable:$true] %s45
      %51 = dma.hbm_to_vmem [thread:$0]  %s44, 3072, %s46, [#allocation6], 64, 64, 4
    $region13: #{tpu_custom_call.1} parent=1 // pred_fallthru
      _
    // Predicated region
    $region14: #{tpu_custom_call.1} parent=1 // pred_check
      _
    $region15: #{tpu_custom_call.1} parent=1 // pred_check_branch
      %53 = sbr.rel (0) target = $region17
    $region16: #{tpu_custom_call.1} parent=1 // pred_region
      %55 = vsyncadd [#allocation9], 0
      %s57 = sshll.u32 %s3, 4
      %s58 = int_to_ptr.hbm [resolvable:$true] %s57
      %s59 = sshll.u32 [#allocation8], 4
      %s60 = int_to_ptr.vmem [resolvable:$true] %s59
      %62 = dma.hbm_to_vmem [thread:$0]  %s58, 64, %s60, [#allocation9]
    $region17: #{tpu_custom_call.1} parent=1 // pred_fallthru
      _
    // Predicated region
    $region18: #{tpu_custom_call.1} parent=1 // pred_check
      _
    $region19: #{tpu_custom_call.1} parent=1 // pred_check_branch
      %64 = sbr.rel (0) target = $region21
    $region20: #{tpu_custom_call.1} parent=1 // pred_region
      %66 = dma.done [#allocation3], 256
    $region21: #{tpu_custom_call.1} parent=1 // pred_fallthru
      _
    // Predicated region
    $region22: #{tpu_custom_call.1} parent=1 // pred_check
      _
    $region23: #{tpu_custom_call.1} parent=1 // pred_check_branch
      %68 = sbr.rel (0) target = $region25
    $region24: #{tpu_custom_call.1} parent=1 // pred_region
      %70 = dma.done [#allocation6], 3072
    $region25: #{tpu_custom_call.1} parent=1 // pred_fallthru
      _
    // Predicated region
    $region26: #{tpu_custom_call.1} parent=1 // pred_check
      _
    $region27: #{tpu_custom_call.1} parent=1 // pred_check_branch
      %72 = sbr.rel (0) target = $region29
    $region28: #{tpu_custom_call.1} parent=1 // pred_region
      %74 = dma.done [#allocation6], 3072
    $region29: #{tpu_custom_call.1} parent=1 // pred_fallthru
      _
    // Predicated region
    $region30: #{tpu_custom_call.1} parent=1 // pred_check
      _
    $region31: #{tpu_custom_call.1} parent=1 // pred_check_branch
      %76 = sbr.rel (0) target = $region33
    $region32: #{tpu_custom_call.1} parent=1 // pred_region
      %78 = dma.done [#allocation9], 64
    $region33: #{tpu_custom_call.1} parent=1 // pred_fallthru
      _
    %v79 = vlaneseq
    %v80 = vshrl.u32 %v79, 7
    %v81 = vadd.s32 %v80, 8
    %v82 = vadd.s32 %v80, 16
    %v83 = vadd.s32 %v80, 24
    %vm84 = vcmp.lt.s32.totalorder %v80, 0
    %v85 = vsub.s32 0, %v80
    %v86 = vsel %vm84, %v85, %v80
    %v87 = vshrl.u32 %v86, 4
    %v88 = vand.u32 %v86, 15
    %v89 = vsub.s32 0, %v88
    %v90 = vsel %vm84, %v89, %v88
    %vm91 = vcmp.lt.s32.totalorder %v81, 0
    %v92 = vsub.s32 0, %v81
    %v93 = vsel %vm91, %v92, %v81
    %v94 = vshrl.u32 %v93, 4
    %v95 = vand.u32 %v93, 15
    %v96 = vsub.s32 0, %v95
    %v97 = vsel %vm91, %v96, %v95
    %vm98 = vcmp.lt.s32.totalorder %v82, 0
    %v99 = vsub.s32 0, %v82
    %v100 = vsel %vm98, %v99, %v82
    %v101 = vshrl.u32 %v100, 4
    %v102 = vand.u32 %v100, 15
    %v103 = vsub.s32 0, %v102
    %v104 = vsel %vm98, %v103, %v102
    %vm105 = vcmp.lt.s32.totalorder %v83, 0
    %v106 = vsub.s32 0, %v83
    %v107 = vsel %vm105, %v106, %v83
    %v108 = vshrl.u32 %v107, 4
    %v109 = vand.u32 %v107, 15
    %v110 = vsub.s32 0, %v109
    %v111 = vsel %vm105, %v110, %v109
    %vm112 = vcmp.ne.s32.totalorder %v90, 0
    %vm113 = vcmp.ne.s32.totalorder %v97, 0
    %vm114 = vcmp.ne.s32.totalorder %v104, 0
    %vm115 = vcmp.ne.s32.totalorder %v111, 0
    %vm116 = vcmp.lt.s32.totalorder %v90, 0
    %vm117 = vcmp.lt.s32.totalorder %v97, 0
    %vm118 = vcmp.lt.s32.totalorder %v104, 0
    %vm119 = vcmp.lt.s32.totalorder %v111, 0
    %vm120 = vmand %vm116, %vm112
    %vm121 = vmand %vm117, %vm113
    %vm122 = vmand %vm118, %vm114
    %vm123 = vmand %vm119, %vm115
    %v124 = vadd.s32 %v90, 16
    %v125 = vadd.s32 %v97, 16
    %v126 = vadd.s32 %v104, 16
    %v127 = vadd.s32 %v111, 16
    %v128 = vsel %vm120, %v124, %v90
    %v129 = vsel %vm121, %v125, %v97
    %v130 = vsel %vm122, %v126, %v104
    %v131 = vsel %vm123, %v127, %v111
    %vm132 = vcmp.ne.s32.totalorder %v128, 0
    %vm133 = vcmp.ne.s32.totalorder %v129, 0
    %vm134 = vcmp.ne.s32.totalorder %v130, 0
    %vm135 = vcmp.ne.s32.totalorder %v131, 0
    %vm136 = vcmp.ne.s32.totalorder %v128, 15
    %vm137 = vcmp.ne.s32.totalorder %v129, 15
    %vm138 = vcmp.ne.s32.totalorder %v130, 15
    %vm139 = vcmp.ne.s32.totalorder %v131, 15
    %v140 = vld [vmem:[#allocation8] sm:$0x1]
    %v141 = vld [vmem:[#allocation8 + $0x1] sm:$0x1]
    %v142 = vld [vmem:[#allocation8 + $0x2] sm:$0x1]
    %v143 = vld [vmem:[#allocation8 + $0x3] sm:$0x1]
    %v144 = vld [vmem:[#allocation2] sm:$0xf]
    %v145 = vld [vmem:[#allocation2 + $0x4] sm:$0xf]
    %v146 = vld [vmem:[#allocation2 + $0x8] sm:$0xf]
    %v147 = vld [vmem:[#allocation2 + $0xc] sm:$0xf]
    %v148 = vld [vmem:[#allocation5] sm:$0xf]
    %v149 = vld [vmem:[#allocation5 + $0x4] sm:$0xf]
    %v150 = vld [vmem:[#allocation5 + $0x8] sm:$0xf]
    %v151 = vld [vmem:[#allocation5 + $0xc] sm:$0xf]
    %v152 = vld [vmem:[#allocation5 + $0x10] sm:$0xf]
    %v153 = vld [vmem:[#allocation5 + $0x14] sm:$0xf]
    %v154 = vld [vmem:[#allocation5 + $0x18] sm:$0xf]
    %v155 = vld [vmem:[#allocation5 + $0x1c] sm:$0xf]
    %v156 = vld [vmem:[#allocation5 + $0x20] sm:$0xf]
    %v157 = vld [vmem:[#allocation5 + $0x24] sm:$0xf]
    %v158 = vld [vmem:[#allocation5 + $0x28] sm:$0xf]
    %v159 = vld [vmem:[#allocation5 + $0x2c] sm:$0xf]
    %v160 = vld [vmem:[#allocation5 + $0x30] sm:$0xf]
    %v161 = vld [vmem:[#allocation5 + $0x34] sm:$0xf]
    %v162 = vld [vmem:[#allocation5 + $0x38] sm:$0xf]
    %v163 = vld [vmem:[#allocation5 + $0x3c] sm:$0xf]
    %v168 = vunpack.c.l.b16 %v144
    %v169 = vunpack.c.l.b16 %v145
    %v170 = vunpack.c.l.b16 %v146
    %v171 = vunpack.c.l.b16 %v147
    %v172 = vpack.c.b16 %v169, %v168
    %v173 = vpack.c.b16 %v171, %v170
    %v192 = vunpack.c.l.b16 %v148
    %v193 = vunpack.c.l.b16 %v149
    %v194 = vunpack.c.l.b16 %v150
    %v195 = vunpack.c.l.b16 %v151
    %v196 = vunpack.c.l.b16 %v152
    %v197 = vunpack.c.l.b16 %v153
    %v198 = vunpack.c.l.b16 %v154
    %v199 = vunpack.c.l.b16 %v155
    %v200 = vunpack.c.l.b16 %v156
    %v201 = vunpack.c.l.b16 %v157
    %v202 = vunpack.c.l.b16 %v158
    %v203 = vunpack.c.l.b16 %v159
    %v204 = vunpack.c.l.b16 %v160
    %v205 = vunpack.c.l.b16 %v161
    %v206 = vunpack.c.l.b16 %v162
    %v207 = vunpack.c.l.b16 %v163
    %v208 = vpack.c.b16 %v193, %v192
    %v209 = vpack.c.b16 %v195, %v194
    %v210 = vpack.c.b16 %v197, %v196
    %v211 = vpack.c.b16 %v199, %v198
    %v212 = vpack.c.b16 %v201, %v200
    %v213 = vpack.c.b16 %v203, %v202
    %v214 = vpack.c.b16 %v205, %v204
    %v215 = vpack.c.b16 %v207, %v206
    %224 = vmatpush.bf16.msra.mxu0 %v215
    %225 = vmatpush.bf16.msra.mxu0 %v214
    %226 = vmatpush.bf16.msra.mxu0 %v213
    %227 = vmatpush.bf16.msra.mxu0 %v212
    %228 = vmatpush.bf16.msra.mxu0 %v211
    %229 = vmatpush.bf16.msra.mxu0 %v210
    %230 = vmatpush.bf16.msra.mxu0 %v209
    %231 = vmatpush.bf16.msra.mxu0 %v208
    %232 = vmatmul.bf16.gmra.mxu0 %v172
    %v233 = vpop.f32.mrf.mxu0
    %v234 = vadd.f32 0.0, %v233
    %v235 = vpop.f32.mrf.mxu0
    %v236 = vadd.f32 0.0, %v235
    %237 = vmatmul.bf16.gmra.mxu0 %v173
    %v238 = vpop.f32.mrf.mxu0
    %v239 = vadd.f32 0.0, %v238
    %v240 = vpop.f32.mrf.mxu0
    %v241 = vadd.f32 0.0, %v240
    %242 = vdwg.mxu0
    %s243 = scalar_lea.vmem [#allocation5], 64
    %v244 = vld [vmem:[%s243] sm:$0xf]
    %v245 = vld [vmem:[%s243 + $0x4] sm:$0xf]
    %v246 = vld [vmem:[%s243 + $0x8] sm:$0xf]
    %v247 = vld [vmem:[%s243 + $0xc] sm:$0xf]
    %v248 = vld [vmem:[%s243 + $0x10] sm:$0xf]
    %v249 = vld [vmem:[%s243 + $0x14] sm:$0xf]
    %v250 = vld [vmem:[%s243 + $0x18] sm:$0xf]
    %v251 = vld [vmem:[%s243 + $0x1c] sm:$0xf]
    %v252 = vld [vmem:[%s243 + $0x20] sm:$0xf]
    %v253 = vld [vmem:[%s243 + $0x24] sm:$0xf]
    %v254 = vld [vmem:[%s243 + $0x28] sm:$0xf]
    %v255 = vld [vmem:[%s243 + $0x2c] sm:$0xf]
    %v256 = vld [vmem:[%s243 + $0x30] sm:$0xf]
    %v257 = vld [vmem:[%s243 + $0x34] sm:$0xf]
    %v258 = vld [vmem:[%s243 + $0x38] sm:$0xf]
    %v259 = vld [vmem:[%s243 + $0x3c] sm:$0xf]
    %s260 = scalar_lea.vmem [#allocation5], 128
    %v261 = vld [vmem:[%s260] sm:$0xf]
    %v262 = vld [vmem:[%s260 + $0x4] sm:$0xf]
    %v263 = vld [vmem:[%s260 + $0x8] sm:$0xf]
    %v264 = vld [vmem:[%s260 + $0xc] sm:$0xf]
    %v265 = vld [vmem:[%s260 + $0x10] sm:$0xf]
    %v266 = vld [vmem:[%s260 + $0x14] sm:$0xf]
    %v267 = vld [vmem:[%s260 + $0x18] sm:$0xf]
    %v268 = vld [vmem:[%s260 + $0x1c] sm:$0xf]
    %v269 = vld [vmem:[%s260 + $0x20] sm:$0xf]
    %v270 = vld [vmem:[%s260 + $0x24] sm:$0xf]
    %v271 = vld [vmem:[%s260 + $0x28] sm:$0xf]
    %v272 = vld [vmem:[%s260 + $0x2c] sm:$0xf]
    %v273 = vld [vmem:[%s260 + $0x30] sm:$0xf]
    %v274 = vld [vmem:[%s260 + $0x34] sm:$0xf]
    %v275 = vld [vmem:[%s260 + $0x38] sm:$0xf]
    %v276 = vld [vmem:[%s260 + $0x3c] sm:$0xf]
    %v293 = vunpack.c.l.b16 %v261
    %v294 = vunpack.c.l.b16 %v262
    %v295 = vunpack.c.l.b16 %v263
    %v296 = vunpack.c.l.b16 %v264
    %v297 = vunpack.c.l.b16 %v265
    %v298 = vunpack.c.l.b16 %v266
    %v299 = vunpack.c.l.b16 %v267
    %v300 = vunpack.c.l.b16 %v268
    %v301 = vunpack.c.l.b16 %v269
    %v302 = vunpack.c.l.b16 %v270
    %v303 = vunpack.c.l.b16 %v271
    %v304 = vunpack.c.l.b16 %v272
    %v305 = vunpack.c.l.b16 %v273
    %v306 = vunpack.c.l.b16 %v274
    %v307 = vunpack.c.l.b16 %v275
    %v308 = vunpack.c.l.b16 %v276
    %v309 = vpack.c.b16 %v294, %v293
    %v310 = vpack.c.b16 %v296, %v295
    %v311 = vpack.c.b16 %v298, %v297
    %v312 = vpack.c.b16 %v300, %v299
    %v313 = vpack.c.b16 %v302, %v301
    %v314 = vpack.c.b16 %v304, %v303
    %v315 = vpack.c.b16 %v306, %v305
    %v316 = vpack.c.b16 %v308, %v307
    %325 = vmatpush.bf16.msra.mxu0 %v316
    %326 = vmatpush.bf16.msra.mxu0 %v315
    %327 = vmatpush.bf16.msra.mxu0 %v314
    %328 = vmatpush.bf16.msra.mxu0 %v313
    %329 = vmatpush.bf16.msra.mxu0 %v312
    %330 = vmatpush.bf16.msra.mxu0 %v311
    %331 = vmatpush.bf16.msra.mxu0 %v310
    %332 = vmatpush.bf16.msra.mxu0 %v309
    %333 = vmatmul.bf16.gmra.mxu0 %v172
    %v334 = vpop.f32.mrf.mxu0
    %v335 = vadd.f32 0.0, %v334
    %v336 = vpop.f32.mrf.mxu0
    %v337 = vadd.f32 0.0, %v336
    %338 = vmatmul.bf16.gmra.mxu0 %v173
    %v339 = vpop.f32.mrf.mxu0
    %v340 = vadd.f32 0.0, %v339
    %v341 = vpop.f32.mrf.mxu0
    %v342 = vadd.f32 0.0, %v341
    %343 = vdwg.mxu0
    %v344 = vrot.slane %v234, 7
    %v345 = vrot.slane %v236, 7
    %v346 = vrot.slane %v239, 7
    %v347 = vrot.slane %v241, 7
    %vm348 = vcmp.lt.s32.totalorder %v80, 1
    %v349 = vsel %vm348, %v346, %v347
    %v350 = vsel %vm348, %v345, %v346
    %v351 = vsel %vm348, %v344, %v345
    %v352 = vsel %vm348, %v347, %v344
    %v353 = vsel %vm132, 1, 0
    %v354 = vsel %vm133, 1, 0
    %v355 = vsel %vm134, 1, 0
    %v356 = vsel %vm135, 1, 0
    %vm357 = vcmp.eq.s32.totalorder %v353, 1
    %vm358 = vcmp.eq.s32.totalorder %v354, 1
    %vm359 = vcmp.eq.s32.totalorder %v355, 1
    %vm360 = vcmp.eq.s32.totalorder %v356, 1
    %v361 = vsel %vm357, %v352, 0.0
    %v362 = vsel %vm358, %v351, 0.0
    %v363 = vsel %vm359, %v350, 0.0
    %v364 = vsel %vm360, %v349, 0.0
    %v365 = vrot.slane %v335, 1
    %v366 = vrot.slane %v337, 1
    %v367 = vrot.slane %v340, 1
    %v368 = vrot.slane %v342, 1
    %vm369 = vcmp.lt.s32.totalorder %v80, 7
    %v370 = vsel %vm369, %v367, %v368
    %v371 = vsel %vm369, %v366, %v367
    %v372 = vsel %vm369, %v365, %v366
    %v373 = vsel %vm369, %v368, %v365
    %v374 = vsel %vm136, 1, 0
    %v375 = vsel %vm137, 1, 0
    %v376 = vsel %vm138, 1, 0
    %v377 = vsel %vm139, 1, 0
    %vm378 = vcmp.eq.s32.totalorder %v374, 1
    %vm379 = vcmp.eq.s32.totalorder %v375, 1
    %vm380 = vcmp.eq.s32.totalorder %v376, 1
    %vm381 = vcmp.eq.s32.totalorder %v377, 1
    %v382 = vsel %vm378, %v372, 0.0
    %v383 = vsel %vm379, %v371, 0.0
    %v384 = vsel %vm380, %v370, 0.0
    %v385 = vsel %vm381, %v373, 0.0
    %v402 = vunpack.c.l.b16 %v244
    %v403 = vunpack.c.l.b16 %v245
    %v404 = vunpack.c.l.b16 %v246
    %v405 = vunpack.c.l.b16 %v247
    %v406 = vunpack.c.l.b16 %v248
    %v407 = vunpack.c.l.b16 %v249
    %v408 = vunpack.c.l.b16 %v250
    %v409 = vunpack.c.l.b16 %v251
    %v410 = vunpack.c.l.b16 %v252
    %v411 = vunpack.c.l.b16 %v253
    %v412 = vunpack.c.l.b16 %v254
    %v413 = vunpack.c.l.b16 %v255
    %v414 = vunpack.c.l.b16 %v256
    %v415 = vunpack.c.l.b16 %v257
    %v416 = vunpack.c.l.b16 %v258
    %v417 = vunpack.c.l.b16 %v259
    %v418 = vpack.c.b16 %v403, %v402
    %v419 = vpack.c.b16 %v405, %v404
    %v420 = vpack.c.b16 %v407, %v406
    %v421 = vpack.c.b16 %v409, %v408
    %v422 = vpack.c.b16 %v411, %v410
    %v423 = vpack.c.b16 %v413, %v412
    %v424 = vpack.c.b16 %v415, %v414
    %v425 = vpack.c.b16 %v417, %v416
    %434 = vmatpush.bf16.msra.mxu0 %v425
    %435 = vmatpush.bf16.msra.mxu0 %v424
    %436 = vmatpush.bf16.msra.mxu0 %v423
    %437 = vmatpush.bf16.msra.mxu0 %v422
    %438 = vmatpush.bf16.msra.mxu0 %v421
    %439 = vmatpush.bf16.msra.mxu0 %v420
    %440 = vmatpush.bf16.msra.mxu0 %v419
    %441 = vmatpush.bf16.msra.mxu0 %v418
    %442 = vmatmul.bf16.gmra.mxu0 %v172
    %v443 = vpop.f32.mrf.mxu0
    %v444 = vadd.f32 %v361, %v443
    %v445 = vpop.f32.mrf.mxu0
    %v446 = vadd.f32 %v362, %v445
    %447 = vmatmul.bf16.gmra.mxu0 %v173
    %v448 = vpop.f32.mrf.mxu0
    %v449 = vadd.f32 %v363, %v448
    %v450 = vpop.f32.mrf.mxu0
    %v451 = vadd.f32 %v364, %v450
    %452 = vdwg.mxu0
    %v453 = vadd.f32 %v444, %v382
    %v454 = vadd.f32 %v446, %v383
    %v455 = vadd.f32 %v449, %v384
    %v456 = vadd.f32 %v451, %v385
    %v457 = vperm.slane %v140, 0
    %v458 = vmul.f32 %v453, %v457
    %v459 = vmul.f32 %v454, %v457
    %v460 = vmul.f32 %v455, %v457
    %v461 = vmul.f32 %v456, %v457
    %v462 = vperm.slane %v141, 0
    %v463 = vadd.f32 %v458, %v462
    %v464 = vadd.f32 %v459, %v462
    %v465 = vadd.f32 %v460, %v462
    %v466 = vadd.f32 %v461, %v462
    %v467 = vmax.f32 %v463, 0.0
    %v468 = vmax.f32 %v464, 0.0
    %v469 = vmax.f32 %v465, 0.0
    %v470 = vmax.f32 %v466, 0.0
    %v471 = vpack.c.bf16 %v468, %v467
    %v472 = vpack.c.bf16 %v470, %v469
    %v473 = vld [vmem:[#allocation7] sm:$0xf]
    %v474 = vld [vmem:[#allocation7 + $0x4] sm:$0xf]
    %v475 = vld [vmem:[#allocation7 + $0x8] sm:$0xf]
    %v476 = vld [vmem:[#allocation7 + $0xc] sm:$0xf]
    %v477 = vld [vmem:[#allocation7 + $0x10] sm:$0xf]
    %v478 = vld [vmem:[#allocation7 + $0x14] sm:$0xf]
    %v479 = vld [vmem:[#allocation7 + $0x18] sm:$0xf]
    %v480 = vld [vmem:[#allocation7 + $0x1c] sm:$0xf]
    %v481 = vld [vmem:[#allocation7 + $0x20] sm:$0xf]
    %v482 = vld [vmem:[#allocation7 + $0x24] sm:$0xf]
    %v483 = vld [vmem:[#allocation7 + $0x28] sm:$0xf]
    %v484 = vld [vmem:[#allocation7 + $0x2c] sm:$0xf]
    %v485 = vld [vmem:[#allocation7 + $0x30] sm:$0xf]
    %v486 = vld [vmem:[#allocation7 + $0x34] sm:$0xf]
    %v487 = vld [vmem:[#allocation7 + $0x38] sm:$0xf]
    %v488 = vld [vmem:[#allocation7 + $0x3c] sm:$0xf]
    %v505 = vunpack.c.l.b16 %v473
    %v506 = vunpack.c.l.b16 %v474
    %v507 = vunpack.c.l.b16 %v475
    %v508 = vunpack.c.l.b16 %v476
    %v509 = vunpack.c.l.b16 %v477
    %v510 = vunpack.c.l.b16 %v478
    %v511 = vunpack.c.l.b16 %v479
    %v512 = vunpack.c.l.b16 %v480
    %v513 = vunpack.c.l.b16 %v481
    %v514 = vunpack.c.l.b16 %v482
    %v515 = vunpack.c.l.b16 %v483
    %v516 = vunpack.c.l.b16 %v484
    %v517 = vunpack.c.l.b16 %v485
    %v518 = vunpack.c.l.b16 %v486
    %v519 = vunpack.c.l.b16 %v487
    %v520 = vunpack.c.l.b16 %v488
    %v521 = vpack.c.b16 %v506, %v505
    %v522 = vpack.c.b16 %v508, %v507
    %v523 = vpack.c.b16 %v510, %v509
    %v524 = vpack.c.b16 %v512, %v511
    %v525 = vpack.c.b16 %v514, %v513
    %v526 = vpack.c.b16 %v516, %v515
    %v527 = vpack.c.b16 %v518, %v517
    %v528 = vpack.c.b16 %v520, %v519
    %537 = vmatpush.bf16.msra.mxu0 %v528
    %538 = vmatpush.bf16.msra.mxu0 %v527
    %539 = vmatpush.bf16.msra.mxu0 %v526
    %540 = vmatpush.bf16.msra.mxu0 %v525
    %541 = vmatpush.bf16.msra.mxu0 %v524
    %542 = vmatpush.bf16.msra.mxu0 %v523
    %543 = vmatpush.bf16.msra.mxu0 %v522
    %544 = vmatpush.bf16.msra.mxu0 %v521
    %545 = vmatmul.bf16.gmra.mxu0 %v471
    %v546 = vpop.f32.mrf.mxu0
    %v547 = vadd.f32 0.0, %v546
    %v548 = vpop.f32.mrf.mxu0
    %v549 = vadd.f32 0.0, %v548
    %550 = vmatmul.bf16.gmra.mxu0 %v472
    %v551 = vpop.f32.mrf.mxu0
    %v552 = vadd.f32 0.0, %v551
    %v553 = vpop.f32.mrf.mxu0
    %v554 = vadd.f32 0.0, %v553
    %555 = vdwg.mxu0
    %s556 = scalar_lea.vmem [#allocation7], 64
    %v557 = vld [vmem:[%s556] sm:$0xf]
    %v558 = vld [vmem:[%s556 + $0x4] sm:$0xf]
    %v559 = vld [vmem:[%s556 + $0x8] sm:$0xf]
    %v560 = vld [vmem:[%s556 + $0xc] sm:$0xf]
    %v561 = vld [vmem:[%s556 + $0x10] sm:$0xf]
    %v562 = vld [vmem:[%s556 + $0x14] sm:$0xf]
    %v563 = vld [vmem:[%s556 + $0x18] sm:$0xf]
    %v564 = vld [vmem:[%s556 + $0x1c] sm:$0xf]
    %v565 = vld [vmem:[%s556 + $0x20] sm:$0xf]
    %v566 = vld [vmem:[%s556 + $0x24] sm:$0xf]
    %v567 = vld [vmem:[%s556 + $0x28] sm:$0xf]
    %v568 = vld [vmem:[%s556 + $0x2c] sm:$0xf]
    %v569 = vld [vmem:[%s556 + $0x30] sm:$0xf]
    %v570 = vld [vmem:[%s556 + $0x34] sm:$0xf]
    %v571 = vld [vmem:[%s556 + $0x38] sm:$0xf]
    %v572 = vld [vmem:[%s556 + $0x3c] sm:$0xf]
    %s573 = scalar_lea.vmem [#allocation7], 128
    %v574 = vld [vmem:[%s573] sm:$0xf]
    %v575 = vld [vmem:[%s573 + $0x4] sm:$0xf]
    %v576 = vld [vmem:[%s573 + $0x8] sm:$0xf]
    %v577 = vld [vmem:[%s573 + $0xc] sm:$0xf]
    %v578 = vld [vmem:[%s573 + $0x10] sm:$0xf]
    %v579 = vld [vmem:[%s573 + $0x14] sm:$0xf]
    %v580 = vld [vmem:[%s573 + $0x18] sm:$0xf]
    %v581 = vld [vmem:[%s573 + $0x1c] sm:$0xf]
    %v582 = vld [vmem:[%s573 + $0x20] sm:$0xf]
    %v583 = vld [vmem:[%s573 + $0x24] sm:$0xf]
    %v584 = vld [vmem:[%s573 + $0x28] sm:$0xf]
    %v585 = vld [vmem:[%s573 + $0x2c] sm:$0xf]
    %v586 = vld [vmem:[%s573 + $0x30] sm:$0xf]
    %v587 = vld [vmem:[%s573 + $0x34] sm:$0xf]
    %v588 = vld [vmem:[%s573 + $0x38] sm:$0xf]
    %v589 = vld [vmem:[%s573 + $0x3c] sm:$0xf]
    %v606 = vunpack.c.l.b16 %v574
    %v607 = vunpack.c.l.b16 %v575
    %v608 = vunpack.c.l.b16 %v576
    %v609 = vunpack.c.l.b16 %v577
    %v610 = vunpack.c.l.b16 %v578
    %v611 = vunpack.c.l.b16 %v579
    %v612 = vunpack.c.l.b16 %v580
    %v613 = vunpack.c.l.b16 %v581
    %v614 = vunpack.c.l.b16 %v582
    %v615 = vunpack.c.l.b16 %v583
    %v616 = vunpack.c.l.b16 %v584
    %v617 = vunpack.c.l.b16 %v585
    %v618 = vunpack.c.l.b16 %v586
    %v619 = vunpack.c.l.b16 %v587
    %v620 = vunpack.c.l.b16 %v588
    %v621 = vunpack.c.l.b16 %v589
    %v622 = vpack.c.b16 %v607, %v606
    %v623 = vpack.c.b16 %v609, %v608
    %v624 = vpack.c.b16 %v611, %v610
    %v625 = vpack.c.b16 %v613, %v612
    %v626 = vpack.c.b16 %v615, %v614
    %v627 = vpack.c.b16 %v617, %v616
    %v628 = vpack.c.b16 %v619, %v618
    %v629 = vpack.c.b16 %v621, %v620
    %638 = vmatpush.bf16.msra.mxu0 %v629
    %639 = vmatpush.bf16.msra.mxu0 %v628
    %640 = vmatpush.bf16.msra.mxu0 %v627
    %641 = vmatpush.bf16.msra.mxu0 %v626
    %642 = vmatpush.bf16.msra.mxu0 %v625
    %643 = vmatpush.bf16.msra.mxu0 %v624
    %644 = vmatpush.bf16.msra.mxu0 %v623
    %645 = vmatpush.bf16.msra.mxu0 %v622
    %646 = vmatmul.bf16.gmra.mxu0 %v471
    %v647 = vpop.f32.mrf.mxu0
    %v648 = vadd.f32 0.0, %v647
    %v649 = vpop.f32.mrf.mxu0
    %v650 = vadd.f32 0.0, %v649
    %651 = vmatmul.bf16.gmra.mxu0 %v472
    %v652 = vpop.f32.mrf.mxu0
    %v653 = vadd.f32 0.0, %v652
    %v654 = vpop.f32.mrf.mxu0
    %v655 = vadd.f32 0.0, %v654
    %656 = vdwg.mxu0
    %v657 = vrot.slane %v547, 7
    %v658 = vrot.slane %v549, 7
    %v659 = vrot.slane %v552, 7
    %v660 = vrot.slane %v554, 7
    %v661 = vsel %vm348, %v659, %v660
    %v662 = vsel %vm348, %v658, %v659
    %v663 = vsel %vm348, %v657, %v658
    %v664 = vsel %vm348, %v660, %v657
    %v665 = vsel %vm357, %v664, 0.0
    %v666 = vsel %vm358, %v663, 0.0
    %v667 = vsel %vm359, %v662, 0.0
    %v668 = vsel %vm360, %v661, 0.0
    %v669 = vrot.slane %v648, 1
    %v670 = vrot.slane %v650, 1
    %v671 = vrot.slane %v653, 1
    %v672 = vrot.slane %v655, 1
    %v673 = vsel %vm369, %v671, %v672
    %v674 = vsel %vm369, %v670, %v671
    %v675 = vsel %vm369, %v669, %v670
    %v676 = vsel %vm369, %v672, %v669
    %v677 = vsel %vm378, %v675, 0.0
    %v678 = vsel %vm379, %v674, 0.0
    %v679 = vsel %vm380, %v673, 0.0
    %v680 = vsel %vm381, %v676, 0.0
    %v697 = vunpack.c.l.b16 %v557
    %v698 = vunpack.c.l.b16 %v558
    %v699 = vunpack.c.l.b16 %v559
    %v700 = vunpack.c.l.b16 %v560
    %v701 = vunpack.c.l.b16 %v561
    %v702 = vunpack.c.l.b16 %v562
    %v703 = vunpack.c.l.b16 %v563
    %v704 = vunpack.c.l.b16 %v564
    %v705 = vunpack.c.l.b16 %v565
    %v706 = vunpack.c.l.b16 %v566
    %v707 = vunpack.c.l.b16 %v567
    %v708 = vunpack.c.l.b16 %v568
    %v709 = vunpack.c.l.b16 %v569
    %v710 = vunpack.c.l.b16 %v570
    %v711 = vunpack.c.l.b16 %v571
    %v712 = vunpack.c.l.b16 %v572
    %v713 = vpack.c.b16 %v698, %v697
    %v714 = vpack.c.b16 %v700, %v699
    %v715 = vpack.c.b16 %v702, %v701
    %v716 = vpack.c.b16 %v704, %v703
    %v717 = vpack.c.b16 %v706, %v705
    %v718 = vpack.c.b16 %v708, %v707
    %v719 = vpack.c.b16 %v710, %v709
    %v720 = vpack.c.b16 %v712, %v711
    %729 = vmatpush.bf16.msra.mxu0 %v720
    %730 = vmatpush.bf16.msra.mxu0 %v719
    %731 = vmatpush.bf16.msra.mxu0 %v718
    %732 = vmatpush.bf16.msra.mxu0 %v717
    %733 = vmatpush.bf16.msra.mxu0 %v716
    %734 = vmatpush.bf16.msra.mxu0 %v715
    %735 = vmatpush.bf16.msra.mxu0 %v714
    %736 = vmatpush.bf16.msra.mxu0 %v713
    %737 = vmatmul.bf16.gmra.mxu0 %v471
    %v738 = vpop.f32.mrf.mxu0
    %v739 = vadd.f32 %v665, %v738
    %v740 = vpop.f32.mrf.mxu0
    %v741 = vadd.f32 %v666, %v740
    %742 = vmatmul.bf16.gmra.mxu0 %v472
    %v743 = vpop.f32.mrf.mxu0
    %v744 = vadd.f32 %v667, %v743
    %v745 = vpop.f32.mrf.mxu0
    %v746 = vadd.f32 %v668, %v745
    %747 = vdwg.mxu0
    %v748 = vadd.f32 %v739, %v677
    %v749 = vadd.f32 %v741, %v678
    %v750 = vadd.f32 %v744, %v679
    %v751 = vadd.f32 %v746, %v680
    %v752 = vperm.slane %v142, 0
    %v753 = vmul.f32 %v748, %v752
    %v754 = vmul.f32 %v749, %v752
    %v755 = vmul.f32 %v750, %v752
    %v756 = vmul.f32 %v751, %v752
    %v757 = vperm.slane %v143, 0
    %v758 = vadd.f32 %v753, %v757
    %v759 = vadd.f32 %v754, %v757
    %v760 = vadd.f32 %v755, %v757
    %v761 = vadd.f32 %v756, %v757
    %v762 = vunpack.c.l.bf16 %v144
    %v763 = vunpack.c.l.bf16 %v145
    %v764 = vunpack.c.l.bf16 %v146
    %v765 = vunpack.c.l.bf16 %v147
    %v766 = vadd.f32 %v758, %v762
    %v767 = vadd.f32 %v759, %v763
    %v768 = vadd.f32 %v760, %v764
    %v769 = vadd.f32 %v761, %v765
    %v770 = vmax.f32 %v766, 0.0
    %v771 = vmax.f32 %v767, 0.0
    %v772 = vmax.f32 %v768, 0.0
    %v773 = vmax.f32 %v769, 0.0
    %v774 = vpack.c.bf16 %v770, %v770
    %v775 = vpack.c.bf16 %v771, %v771
    %v776 = vpack.c.bf16 %v772, %v772
    %v777 = vpack.c.bf16 %v773, %v773
    %778 = vst [vmem:[#allocation10] sm:$0xf] %v774
    %779 = vst [vmem:[#allocation10 + $0x4] sm:$0xf] %v775
    %780 = vst [vmem:[#allocation10 + $0x8] sm:$0xf] %v776
    %781 = vst [vmem:[#allocation10 + $0xc] sm:$0xf] %v777
    // Predicated region
    $region34: #{tpu_custom_call.1} parent=1 // pred_check
      _
    $region35: #{tpu_custom_call.1} parent=1 // pred_check_branch
      %783 = sbr.rel (0) target = $region37
    $region36: #{tpu_custom_call.1} parent=1 // pred_region
      %785 = vsyncadd [#allocation4], 0
      %s786 = sshll.u32 [#allocation10], 4
      %s787 = int_to_ptr.vmem [resolvable:$true] %s786
      %s788 = sshll.u32 %s4, 4
      %s789 = int_to_ptr.hbm [resolvable:$true] %s788
      %794 = dma.vmem_to_hbm [thread:$0]  %s787, 256, %s789, [#allocation4], 64, 64, 4
    $region37: #{tpu_custom_call.1} parent=1 // pred_fallthru
      _
    // Predicated region
    $region38: #{tpu_custom_call.1} parent=1 // pred_check
      _
    $region39: #{tpu_custom_call.1} parent=1 // pred_check_branch
      %796 = sbr.rel (0) target = $region41
    $region40: #{tpu_custom_call.1} parent=1 // pred_region
      %798 = dma.done [#allocation4], 256
    $region41: #{tpu_custom_call.1} parent=1 // pred_fallthru
      _
    %799 = vsyncpa [#allocation3], 1
    %800 = vsyncpa [#allocation6], 1
    %801 = vsyncpa [#allocation9], 1
    %802 = vsyncpa [#allocation4], 1

</llo_original>
